<compile_context>
chip_gen: v7x
topology: tpu7x:2x2x1
jax: 0.10.0
libtpu: 0.0.40
codegen_flags: <defaults>
</compile_context>

<pallas_src>
import jax
import jax.numpy as jnp
from jax.experimental import pallas as pl
from jax.experimental.pallas import tpu as pltpu

# utl.squash_action(actions, args): tanh(actions) iff args.norm_actions_post_sampling
NORM_ACTIONS_POST_SAMPLING = True

# Module hyper-parameters (small, consistent with the reference module).
LATENT_DIM = 32
STATE_DIM = 16
STATE_EMBED_DIM = 32
ACTION_DIM = 4
ACTION_EMBED_DIM = 16
LAYERS = (64, 64)             # kernel below is written for exactly 2 hidden fc layers
PRED_TYPE = "deterministic"   # -> fc_out output dim == STATE_DIM
OUT_DIM = 2 * STATE_DIM if PRED_TYPE == "gaussian" else STATE_DIM

CAT_DIM = LATENT_DIM + STATE_DIM + ACTION_DIM               # 52 raw input lanes
CAT_PAD = 64                                                # padded input lane width
ENC_DIM = LATENT_DIM + STATE_EMBED_DIM + ACTION_EMBED_DIM   # 80 = fc1 fan-in
ENC_PAD = 128                                               # padded fc1 fan-in
ROW_ALIGN = 16                                              # bf16 sublane packing


def _decoder_kernel(x_ref, we_ref, be_ref, lo_ref,
                    w1_ref, b1_ref, w2_ref, b2_ref, wo_ref, bo_ref,
                    out_ref):
    # x = [latent | state | actions | 0-pad] in bf16.  Squash only the action lanes
    # (tanh computed in f32: v5e VPU/EUP have no bf16 path).
    xf = x_ref[...].astype(jnp.float32)
    if NORM_ACTIONS_POST_SAMPLING:
        lane = jax.lax.broadcasted_iota(jnp.int32, (1, CAT_PAD), 1)
        a0 = LATENT_DIM + STATE_DIM
        is_action = (lane >= a0) & (lane < a0 + ACTION_DIM)
        xf = jnp.where(is_action, jnp.tanh(xf), xf)
    x = xf.astype(jnp.bfloat16)

    # Fused "cat(latent, relu(Ws s + bs), relu(Wa a + ba))" in ONE matmul:
    # W_enc = block [I | Ws | Wa]; selective relu via per-lane lower bound
    # (-1e30 on latent lanes, 0 on hs/ha/padding lanes).
    h = jnp.dot(x, we_ref[...], preferred_element_type=jnp.float32) + be_ref[...]
    h = jnp.maximum(h, lo_ref[...]).astype(jnp.bfloat16)

    # fc_layers[0]: single K=128 pass against zero-padded W1 (rows 80:128 are 0).
    h = jnp.dot(h, w1_ref[...], preferred_element_type=jnp.float32) + b1_ref[...]
    h = jnp.maximum(h, 0.0).astype(jnp.bfloat16)

    # fc_layers[1]
    h = jnp.dot(h, w2_ref[...], preferred_element_type=jnp.float32) + b2_ref[...]
    h = jnp.maximum(h, 0.0).astype(jnp.bfloat16)

    # fc_out (no activation); f32 accumulation + f32 bias, stored as f32.
    # TODO(synk): OUT_DIM=16 (<128 lanes) still stores via masked vst; a fully
    # lane-dense (rows/8, 128) out layout needs a sublane->lane relayout and was
    # left out to keep lowering simple for this tiny head.
    out_ref[...] = (jnp.dot(h, wo_ref[...], preferred_element_type=jnp.float32)
                    + bo_ref[...]).astype(out_ref.dtype)


def init_params(key):
    """Deterministic synthetic parameters (PyTorch Linear shapes, stored transposed:
    y = x @ W + b, i.e. W = W_pytorch.T)."""
    ks = jax.random.split(key, 10)
    sc = 0.1

    def lin(kw, kb, d_in, d_out):
        w = sc * jax.random.normal(kw, (d_in, d_out), jnp.float32)
        b = sc * jax.random.normal(kb, (1, d_out), jnp.float32)
        return w, b

    ws, bs = lin(ks[0], ks[1], STATE_DIM, STATE_EMBED_DIM)
    wa, ba = lin(ks[2], ks[3], ACTION_DIM, ACTION_EMBED_DIM)
    w1, b1 = lin(ks[4], ks[5], ENC_DIM, LAYERS[0])
    w2, b2 = lin(ks[6], ks[7], LAYERS[0], LAYERS[1])
    wo, bo = lin(ks[8], ks[9], LAYERS[1], OUT_DIM)
    return dict(ws=ws, bs=bs, wa=wa, ba=ba, w1=w1, b1=b1, w2=w2, b2=b2, wo=wo, bo=bo)


def pack_params(p):
    """One-time repack: fuse encoders + latent pass-through into one block matrix,
    zero-pad fc1 to K=128, cast matmul operands to bf16 (biases/bounds stay f32)."""
    f32, bf16 = jnp.float32, jnp.bfloat16

    we = jnp.zeros((CAT_PAD, ENC_PAD), f32)
    we = we.at[:LATENT_DIM, :LATENT_DIM].set(jnp.eye(LATENT_DIM, dtype=f32))
    we = we.at[LATENT_DIM:LATENT_DIM + STATE_DIM,
               LATENT_DIM:LATENT_DIM + STATE_EMBED_DIM].set(p["ws"])
    we = we.at[LATENT_DIM + STATE_DIM:CAT_DIM,
               LATENT_DIM + STATE_EMBED_DIM:ENC_DIM].set(p["wa"])

    be = jnp.zeros((1, ENC_PAD), f32)
    be = be.at[:, LATENT_DIM:LATENT_DIM + STATE_EMBED_DIM].set(p["bs"])
    be = be.at[:, LATENT_DIM + STATE_EMBED_DIM:ENC_DIM].set(p["ba"])

    # selective relu: latent lanes pass through, hs/ha/padding lanes get relu
    lower = jnp.full((1, ENC_PAD), -1e30, f32).at[:, LATENT_DIM:].set(0.0)

    w1 = jnp.zeros((ENC_PAD, LAYERS[0]), f32).at[:ENC_DIM, :].set(p["w1"])

    return dict(we=we.astype(bf16), be=be, lower=lower,
                w1=w1.astype(bf16), b1=p["b1"],
                w2=p["w2"].astype(bf16), b2=p["b2"],
                wo=p["wo"].astype(bf16), bo=p["bo"])


def _round_up(x, m):
    return ((x + m - 1) // m) * m


def state_transition_decoder(latent_state, state, actions, packed, *, tile_rows=512):
    """Forward pass.  Any leading dims (e.g. (seq, batch)) are flattened into rows,
    matching the PyTorch module which only operates on the trailing feature dim."""
    lead = latent_state.shape[:-1]
    rows = 1
    for d in lead:
        rows *= d
    latent = latent_state.reshape(rows, LATENT_DIM)
    state = state.reshape(rows, STATE_DIM)
    actions = actions.reshape(rows, ACTION_DIM)

    # Large row tiles (amortise per-step overhead, fill the MXU), capped at
    # ceil(rows/2) so the 'parallel' grid keeps >=2 steps for v7x's two TCs.
    tr = max(ROW_ALIGN, min(tile_rows, _round_up(pl.cdiv(rows, 2), ROW_ALIGN)))
    rows_pad = _round_up(rows, tr)
    grid = (rows_pad // tr,)

    # Single lane-dense input block, bf16 on the DMA/matmul path.
    x = jnp.concatenate([latent, state, actions], axis=-1)          # (rows, 52)
    x = jnp.pad(x, ((0, rows_pad - rows), (0, CAT_PAD - CAT_DIM)))  # (rows_pad, 64)
    x = x.astype(jnp.bfloat16)

    weights = [packed["we"], packed["be"], packed["lower"],
               packed["w1"], packed["b1"],
               packed["w2"], packed["b2"],
               packed["wo"], packed["bo"]]

    out = pl.pallas_call(
        _decoder_kernel,
        out_shape=jax.ShapeDtypeStruct((rows_pad, OUT_DIM), jnp.float32),
        grid=grid,
        in_specs=[pl.BlockSpec((tr, CAT_PAD), lambda i: (i, 0))]
                 + [pl.BlockSpec(w.shape, lambda i: (0, 0)) for w in weights],
        out_specs=pl.BlockSpec((tr, OUT_DIM), lambda i: (i, 0)),
        compiler_params=pltpu.CompilerParams(dimension_semantics=("parallel",)),
    )(x, *weights)

    return out[:rows].reshape(*lead, OUT_DIM)


def reference(latent_state, state, actions, p):
    a = jnp.tanh(actions) if NORM_ACTIONS_POST_SAMPLING else actions
    ha = jax.nn.relu(a @ p["wa"] + p["ba"])
    hs = jax.nn.relu(state @ p["ws"] + p["bs"])
    h = jnp.concatenate([latent_state, hs, ha], axis=-1)
    h = jax.nn.relu(h @ p["w1"] + p["b1"])
    h = jax.nn.relu(h @ p["w2"] + p["b2"])
    return h @ p["wo"] + p["bo"]


if __name__ == "__main__":
    key = jax.random.PRNGKey(0)
    k_in, k_par = jax.random.split(key)
    k_lat, k_st, k_act = jax.random.split(k_in, 3)

    # (seq=8, batch=4) leading dims, flattened into 32 rows inside the wrapper.
    SEQ, BATCH = 8, 4
    latent_state = jax.random.normal(k_lat, (SEQ, BATCH, LATENT_DIM), jnp.float32)
    state = jax.random.normal(k_st, (SEQ, BATCH, STATE_DIM), jnp.float32)
    actions = jax.random.normal(k_act, (SEQ, BATCH, ACTION_DIM), jnp.float32)

    params = init_params(k_par)
    packed = pack_params(params)

    out = state_transition_decoder(latent_state, state, actions, packed)
    out = jax.block_until_ready(out)

    ref = reference(latent_state, state, actions, params)
    assert out.shape == (SEQ, BATCH, OUT_DIM)
    # bf16 matmul operands (f32 MXU accumulation) vs a pure-f32 reference.
    err = float(jnp.max(jnp.abs(out - ref)))
    assert err < 5e-2, f"kernel mismatch vs reference: max abs err {err}"

    print("KERNEL_OK")
</pallas_src>

<mosaic_0001>
module attributes {stable_mosaic.version = 11 : i64} {
  func.func @_decoder_kernel(%arg0: i32, %arg1: memref<16x64xbf16, #tpu.memory_space<vmem>>, %arg2: memref<64x128xbf16, #tpu.memory_space<vmem>>, %arg3: memref<1x128xf32, #tpu.memory_space<vmem>>, %arg4: memref<1x128xf32, #tpu.memory_space<vmem>>, %arg5: memref<128x64xbf16, #tpu.memory_space<vmem>>, %arg6: memref<1x64xf32, #tpu.memory_space<vmem>>, %arg7: memref<64x64xbf16, #tpu.memory_space<vmem>>, %arg8: memref<1x64xf32, #tpu.memory_space<vmem>>, %arg9: memref<64x16xbf16, #tpu.memory_space<vmem>>, %arg10: memref<1x16xf32, #tpu.memory_space<vmem>>, %arg11: memref<16x16xf32, #tpu.memory_space<vmem>>) attributes {dimension_semantics = [#tpu.dimension_semantics<parallel>], iteration_bounds = array<i64: 2>, scalar_prefetch = 0 : i64, scratch_operands = 0 : i64, tpu.core_type = #tpu.core_type<tc>, window_params = [{transform_indices = @transform_0, window_bounds = array<i64: 16, 64>}, {pipeline_mode = #tpu.pipeline_mode<synchronous>, transform_indices = @transform_1, window_bounds = array<i64: 64, 128>}, {pipeline_mode = #tpu.pipeline_mode<synchronous>, transform_indices = @transform_2, window_bounds = array<i64: 1, 128>}, {pipeline_mode = #tpu.pipeline_mode<synchronous>, transform_indices = @transform_3, window_bounds = array<i64: 1, 128>}, {pipeline_mode = #tpu.pipeline_mode<synchronous>, transform_indices = @transform_4, window_bounds = array<i64: 128, 64>}, {pipeline_mode = #tpu.pipeline_mode<synchronous>, transform_indices = @transform_5, window_bounds = array<i64: 1, 64>}, {pipeline_mode = #tpu.pipeline_mode<synchronous>, transform_indices = @transform_6, window_bounds = array<i64: 64, 64>}, {pipeline_mode = #tpu.pipeline_mode<synchronous>, transform_indices = @transform_7, window_bounds = array<i64: 1, 64>}, {pipeline_mode = #tpu.pipeline_mode<synchronous>, transform_indices = @transform_8, window_bounds = array<i64: 64, 16>}, {pipeline_mode = #tpu.pipeline_mode<synchronous>, transform_indices = @transform_9, window_bounds = array<i64: 1, 16>}, {transform_indices = @transform_10, window_bounds = array<i64: 16, 16>}]} {
    %c0 = arith.constant 0 : index
    %c0_0 = arith.constant 0 : index
    %0 = vector.load %arg1[%c0, %c0_0] : memref<16x64xbf16, #tpu.memory_space<vmem>>, vector<16x64xbf16>
    %1 = arith.extf %0 : vector<16x64xbf16> to vector<16x64xf32>
    %2 = tpu.iota {dimensions = array<i32: 1>} : vector<1x64xi32>
    %c48_i32 = arith.constant 48 : i32
    %3 = vector.broadcast %c48_i32 : i32 to vector<1x64xi32>
    %4 = arith.cmpi sge, %2, %3 : vector<1x64xi32>
    %c52_i32 = arith.constant 52 : i32
    %5 = vector.broadcast %c52_i32 : i32 to vector<1x64xi32>
    %6 = arith.cmpi slt, %2, %5 : vector<1x64xi32>
    %7 = arith.andi %4, %6 : vector<1x64xi1>
    %8 = math.tanh %1 : vector<16x64xf32>
    %9 = vector.shape_cast %7 : vector<1x64xi1> to vector<1x64xi1>
    %10 = vector.broadcast %9 : vector<1x64xi1> to vector<16x64xi1>
    %11 = arith.select %10, %8, %1 : vector<16x64xi1>, vector<16x64xf32>
    %12 = arith.truncf %11 : vector<16x64xf32> to vector<16x64xbf16>
    %c0_1 = arith.constant 0 : index
    %c0_2 = arith.constant 0 : index
    %13 = vector.load %arg2[%c0_1, %c0_2] : memref<64x128xbf16, #tpu.memory_space<vmem>>, vector<64x128xbf16>
    %cst = arith.constant dense<0.000000e+00> : vector<16x128xf32>
    %14 = tpu.matmul %12, %13, %cst {dimension_numbers = #tpu.dot_dimension_numbers<[1], [0], [0], [1], [0, 0, 1, 1], [], []>} : vector<16x64xbf16>, vector<64x128xbf16>, vector<16x128xf32> -> vector<16x128xf32>
    %c0_3 = arith.constant 0 : index
    %c0_4 = arith.constant 0 : index
    %15 = vector.load %arg3[%c0_3, %c0_4] : memref<1x128xf32, #tpu.memory_space<vmem>>, vector<1x128xf32>
    %16 = vector.broadcast %15 : vector<1x128xf32> to vector<16x128xf32>
    %17 = arith.addf %14, %16 : vector<16x128xf32>
    %c0_5 = arith.constant 0 : index
    %c0_6 = arith.constant 0 : index
    %18 = vector.load %arg4[%c0_5, %c0_6] : memref<1x128xf32, #tpu.memory_space<vmem>>, vector<1x128xf32>
    %19 = vector.broadcast %18 : vector<1x128xf32> to vector<16x128xf32>
    %20 = arith.maximumf %17, %19 : vector<16x128xf32>
    %21 = arith.truncf %20 : vector<16x128xf32> to vector<16x128xbf16>
    %c0_7 = arith.constant 0 : index
    %c0_8 = arith.constant 0 : index
    %22 = vector.load %arg5[%c0_7, %c0_8] : memref<128x64xbf16, #tpu.memory_space<vmem>>, vector<128x64xbf16>
    %cst_9 = arith.constant dense<0.000000e+00> : vector<16x64xf32>
    %23 = tpu.matmul %21, %22, %cst_9 {dimension_numbers = #tpu.dot_dimension_numbers<[1], [0], [0], [1], [0, 0, 1, 1], [], []>} : vector<16x128xbf16>, vector<128x64xbf16>, vector<16x64xf32> -> vector<16x64xf32>
    %c0_10 = arith.constant 0 : index
    %c0_11 = arith.constant 0 : index
    %24 = vector.load %arg6[%c0_10, %c0_11] : memref<1x64xf32, #tpu.memory_space<vmem>>, vector<1x64xf32>
    %25 = vector.broadcast %24 : vector<1x64xf32> to vector<16x64xf32>
    %26 = arith.addf %23, %25 : vector<16x64xf32>
    %cst_12 = arith.constant 0.000000e+00 : f32
    %27 = vector.broadcast %cst_12 : f32 to vector<16x64xf32>
    %28 = arith.maximumf %26, %27 : vector<16x64xf32>
    %29 = arith.truncf %28 : vector<16x64xf32> to vector<16x64xbf16>
    %c0_13 = arith.constant 0 : index
    %c0_14 = arith.constant 0 : index
    %30 = vector.load %arg7[%c0_13, %c0_14] : memref<64x64xbf16, #tpu.memory_space<vmem>>, vector<64x64xbf16>
    %cst_15 = arith.constant dense<0.000000e+00> : vector<16x64xf32>
    %31 = tpu.matmul %29, %30, %cst_15 {dimension_numbers = #tpu.dot_dimension_numbers<[1], [0], [0], [1], [0, 0, 1, 1], [], []>} : vector<16x64xbf16>, vector<64x64xbf16>, vector<16x64xf32> -> vector<16x64xf32>
    %c0_16 = arith.constant 0 : index
    %c0_17 = arith.constant 0 : index
    %32 = vector.load %arg8[%c0_16, %c0_17] : memref<1x64xf32, #tpu.memory_space<vmem>>, vector<1x64xf32>
    %33 = vector.broadcast %32 : vector<1x64xf32> to vector<16x64xf32>
    %34 = arith.addf %31, %33 : vector<16x64xf32>
    %cst_18 = arith.constant 0.000000e+00 : f32
    %35 = vector.broadcast %cst_18 : f32 to vector<16x64xf32>
    %36 = arith.maximumf %34, %35 : vector<16x64xf32>
    %37 = arith.truncf %36 : vector<16x64xf32> to vector<16x64xbf16>
    %c0_19 = arith.constant 0 : index
    %c0_20 = arith.constant 0 : index
    %38 = vector.load %arg9[%c0_19, %c0_20] : memref<64x16xbf16, #tpu.memory_space<vmem>>, vector<64x16xbf16>
    %cst_21 = arith.constant dense<0.000000e+00> : vector<16x16xf32>
    %39 = tpu.matmul %37, %38, %cst_21 {dimension_numbers = #tpu.dot_dimension_numbers<[1], [0], [0], [1], [0, 0, 1, 1], [], []>} : vector<16x64xbf16>, vector<64x16xbf16>, vector<16x16xf32> -> vector<16x16xf32>
    %c0_22 = arith.constant 0 : index
    %c0_23 = arith.constant 0 : index
    %40 = vector.load %arg10[%c0_22, %c0_23] : memref<1x16xf32, #tpu.memory_space<vmem>>, vector<1x16xf32>
    %41 = vector.broadcast %40 : vector<1x16xf32> to vector<16x16xf32>
    %42 = arith.addf %39, %41 : vector<16x16xf32>
    %c0_24 = arith.constant 0 : index
    %c0_25 = arith.constant 0 : index
    %43 = vector.load %arg11[%c0_24, %c0_25] : memref<16x16xf32, #tpu.memory_space<vmem>>, vector<16x16xf32>
    tpu.vector_store %arg11[%c0_24, %c0_25], %42 {strides = array<i32>} : memref<16x16xf32, #tpu.memory_space<vmem>>, vector<16x16xf32>,
    return
  }
  func.func @transform_0(%arg0: i32) -> (i32, i32) {
    %c0_i32 = arith.constant 0 : i32
    %c0_i32_0 = arith.constant 0 : i32
    return %arg0, %c0_i32 : i32, i32
  }
  func.func @transform_1(%arg0: i32) -> (i32, i32) {
    %c0_i32 = arith.constant 0 : i32
    %c0_i32_0 = arith.constant 0 : i32
    %c0_i32_1 = arith.constant 0 : i32
    return %c0_i32, %c0_i32_0 : i32, i32
  }
  func.func @transform_2(%arg0: i32) -> (i32, i32) {
    %c0_i32 = arith.constant 0 : i32
    %c0_i32_0 = arith.constant 0 : i32
    %c0_i32_1 = arith.constant 0 : i32
    return %c0_i32, %c0_i32_0 : i32, i32
  }
  func.func @transform_3(%arg0: i32) -> (i32, i32) {
    %c0_i32 = arith.constant 0 : i32
    %c0_i32_0 = arith.constant 0 : i32
    %c0_i32_1 = arith.constant 0 : i32
    return %c0_i32, %c0_i32_0 : i32, i32
  }
  func.func @transform_4(%arg0: i32) -> (i32, i32) {
    %c0_i32 = arith.constant 0 : i32
    %c0_i32_0 = arith.constant 0 : i32
    %c0_i32_1 = arith.constant 0 : i32
    return %c0_i32, %c0_i32_0 : i32, i32
  }
  func.func @transform_5(%arg0: i32) -> (i32, i32) {
    %c0_i32 = arith.constant 0 : i32
    %c0_i32_0 = arith.constant 0 : i32
    %c0_i32_1 = arith.constant 0 : i32
    return %c0_i32, %c0_i32_0 : i32, i32
  }
  func.func @transform_6(%arg0: i32) -> (i32, i32) {
    %c0_i32 = arith.constant 0 : i32
    %c0_i32_0 = arith.constant 0 : i32
    %c0_i32_1 = arith.constant 0 : i32
    return %c0_i32, %c0_i32_0 : i32, i32
  }
  func.func @transform_7(%arg0: i32) -> (i32, i32) {
    %c0_i32 = arith.constant 0 : i32
    %c0_i32_0 = arith.constant 0 : i32
    %c0_i32_1 = arith.constant 0 : i32
    return %c0_i32, %c0_i32_0 : i32, i32
  }
  func.func @transform_8(%arg0: i32) -> (i32, i32) {
    %c0_i32 = arith.constant 0 : i32
    %c0_i32_0 = arith.constant 0 : i32
    %c0_i32_1 = arith.constant 0 : i32
    return %c0_i32, %c0_i32_0 : i32, i32
  }
  func.func @transform_9(%arg0: i32) -> (i32, i32) {
    %c0_i32 = arith.constant 0 : i32
    %c0_i32_0 = arith.constant 0 : i32
    %c0_i32_1 = arith.constant 0 : i32
    return %c0_i32, %c0_i32_0 : i32, i32
  }
  func.func @transform_10(%arg0: i32) -> (i32, i32) {
    %c0_i32 = arith.constant 0 : i32
    %c0_i32_0 = arith.constant 0 : i32
    return %arg0, %c0_i32 : i32, i32
  }
}

</mosaic_0001>

<llo_original>
// kernel: tpu_custom_call.1
$region0: #{tpu_custom_call.1}
  #allocation0 [shape = 'u32[]', space=smem, size = 0x4, offset = 0x4, fixed_abs, tag = 'smem constant byte address 0x4 - core index']
  #allocation1 [shape = 'u32[144,128]{1,0:T(1,128)}', space=vmem, size = 0x12000, scoped, tag = 'internal scratch']
  %s0 = inlined_call_operand.vmem [shape: bf16[32,64], index: 0, kind: input, shape index: {}]
  %s1 = inlined_call_operand.vmem [shape: bf16[64,128], index: 1, kind: input, shape index: {}]
  %s2 = inlined_call_operand.vmem [shape: f32[1,128], index: 2, kind: input, shape index: {}]
  %s3 = inlined_call_operand.vmem [shape: f32[1,128], index: 3, kind: input, shape index: {}]
  %s4 = inlined_call_operand.vmem [shape: bf16[128,64], index: 4, kind: input, shape index: {}]
  %s5 = inlined_call_operand.vmem [shape: f32[1,64], index: 5, kind: input, shape index: {}]
  %s6 = inlined_call_operand.vmem [shape: bf16[64,64], index: 6, kind: input, shape index: {}]
  %s7 = inlined_call_operand.vmem [shape: f32[1,64], index: 7, kind: input, shape index: {}]
  %s8 = inlined_call_operand.vmem [shape: bf16[64,16], index: 8, kind: input, shape index: {}]
  %s9 = inlined_call_operand.vmem [shape: f32[1,16], index: 9, kind: input, shape index: {}]
  %s10 = inlined_call_operand.vmem [shape: f32[32,16], index: 10, kind: output, shape index: {}]
  %s11 = sld [smem:[#allocation0]]
  $region73: #{tpu_custom_call.1} parent=0
    _
  %s13 = ssub.s32 1, %s11
  %s14 = scalar_select 0, %s13, %s11
  loop: start=0, step=1, limit=4
  $region2: #{tpu_custom_call.1} parent=0 // loop_pre_header
    _
  $region3: #{tpu_custom_call.1} parent=0 // loop_header
    %s16 = sphi 0, %s20
    %p17 = scmp.ge.s32.totalorder %s16, 4
    %s26 = sphi 0, %s28
    %s29 = sphi 0, %s26
    %s30 = sphi 0, %s29
    %s46 = sphi 0, %s30
    %s50 = sphi 0, %s50
    %s52 = sphi 0, %s50
    %s53 = sphi 0, %s52
    %s67 = sphi 0, %s53
    %s71 = sphi 0, %s71
    %s73 = sphi 0, %s71
    %s74 = sphi 0, %s73
    %s88 = sphi 0, %s74
    %s92 = sphi 0, %s92
    %s94 = sphi 0, %s92
    %s95 = sphi 0, %s94
    %s109 = sphi 0, %s95
    %s113 = sphi 0, %s113
    %s115 = sphi 0, %s113
    %s116 = sphi 0, %s115
    %s130 = sphi 0, %s116
    %s134 = sphi 0, %s134
    %s136 = sphi 0, %s134
    %s137 = sphi 0, %s136
    %s151 = sphi 0, %s137
    %s155 = sphi 0, %s155
    %s157 = sphi 0, %s155
    %s158 = sphi 0, %s157
    %s172 = sphi 0, %s158
    %s176 = sphi 0, %s176
    %s178 = sphi 0, %s176
    %s179 = sphi 0, %s178
    %s193 = sphi 0, %s179
    %s197 = sphi 0, %s197
    %s199 = sphi 0, %s197
    %s200 = sphi 0, %s199
    %s214 = sphi 0, %s200
    %s218 = sphi 0, %s218
    %s220 = sphi 0, %s218
    %s221 = sphi 0, %s220
    %s235 = sphi 0, %s221
    %s241 = sphi 0, %s243
    %s244 = sphi 0, %s241
    %s245 = sphi 0, %s244
    %s261 = sphi 0, %s245
  $region4: #{tpu_custom_call.1} parent=0 // loop_header_branch
    %19 = sbr.rel (%p17) target = $region8
  $region5: #{tpu_custom_call.1} parent=0 // loop_body
    %s21 = ssub.s32 %s16, 1
    %s22 = ssub.s32 %s16, 2
    %s23 = sadd.s32 %s16, 1
    %s24 = ssub.s32 %s16, %s23
    %p25 = scmp.eq.s32.totalorder %s24, 0
    %s27 = sadd.s32 %s26, 1
    %s28 = scalar_select %p25, %s26, %s27
    %p31 = pneg %p25
    %p32 = scmp.eq.s32.totalorder %s16, 1
    %p33 = por %p31, %p32
    %p34 = scmp.ne.s32.totalorder %s26, %s29
    %p35 = scmp.eq.s32.totalorder %s16, 0
    %p36 = por %p34, %p35
    %p37 = scmp.ne.s32.totalorder %s26, %s29
    %p38 = scmp.eq.s32.totalorder %s21, 1
    %p39 = por %p37, %p38
    %p40 = scmp.ne.s32.totalorder %s29, %s30
    %p41 = scmp.eq.s32.totalorder %s21, 0
    %p42 = por %p40, %p41
    %p43 = scmp.ne.s32.totalorder %s29, %s30
    %p44 = scmp.eq.s32.totalorder %s22, 1
    %p45 = por %p43, %p44
    %p47 = scmp.ne.s32.totalorder %s30, %s46
    %p48 = scmp.eq.s32.totalorder %s22, 0
    %p49 = por %p47, %p48
    %s51 = sadd.s32 %s50, 1
    %p54 = scmp.eq.s32.totalorder %s16, 1
    %p55 = scmp.ne.s32.totalorder %s50, %s52
    %p56 = scmp.eq.s32.totalorder %s16, 0
    %p57 = por %p55, %p56
    %p58 = scmp.ne.s32.totalorder %s50, %s52
    %p59 = scmp.eq.s32.totalorder %s21, 1
    %p60 = por %p58, %p59
    %p61 = scmp.ne.s32.totalorder %s52, %s53
    %p62 = scmp.eq.s32.totalorder %s21, 0
    %p63 = por %p61, %p62
    %p64 = scmp.ne.s32.totalorder %s52, %s53
    %p65 = scmp.eq.s32.totalorder %s22, 1
    %p66 = por %p64, %p65
    %p68 = scmp.ne.s32.totalorder %s53, %s67
    %p69 = scmp.eq.s32.totalorder %s22, 0
    %p70 = por %p68, %p69
    %s72 = sadd.s32 %s71, 1
    %p75 = scmp.eq.s32.totalorder %s16, 1
    %p76 = scmp.ne.s32.totalorder %s71, %s73
    %p77 = scmp.eq.s32.totalorder %s16, 0
    %p78 = por %p76, %p77
    %p79 = scmp.ne.s32.totalorder %s71, %s73
    %p80 = scmp.eq.s32.totalorder %s21, 1
    %p81 = por %p79, %p80
    %p82 = scmp.ne.s32.totalorder %s73, %s74
    %p83 = scmp.eq.s32.totalorder %s21, 0
    %p84 = por %p82, %p83
    %p85 = scmp.ne.s32.totalorder %s73, %s74
    %p86 = scmp.eq.s32.totalorder %s22, 1
    %p87 = por %p85, %p86
    %p89 = scmp.ne.s32.totalorder %s74, %s88
    %p90 = scmp.eq.s32.totalorder %s22, 0
    %p91 = por %p89, %p90
    %s93 = sadd.s32 %s92, 1
    %p96 = scmp.eq.s32.totalorder %s16, 1
    %p97 = scmp.ne.s32.totalorder %s92, %s94
    %p98 = scmp.eq.s32.totalorder %s16, 0
    %p99 = por %p97, %p98
    %p100 = scmp.ne.s32.totalorder %s92, %s94
    %p101 = scmp.eq.s32.totalorder %s21, 1
    %p102 = por %p100, %p101
    %p103 = scmp.ne.s32.totalorder %s94, %s95
    %p104 = scmp.eq.s32.totalorder %s21, 0
    %p105 = por %p103, %p104
    %p106 = scmp.ne.s32.totalorder %s94, %s95
    %p107 = scmp.eq.s32.totalorder %s22, 1
    %p108 = por %p106, %p107
    %p110 = scmp.ne.s32.totalorder %s95, %s109
    %p111 = scmp.eq.s32.totalorder %s22, 0
    %p112 = por %p110, %p111
    %s114 = sadd.s32 %s113, 1
    %p117 = scmp.eq.s32.totalorder %s16, 1
    %p118 = scmp.ne.s32.totalorder %s113, %s115
    %p119 = scmp.eq.s32.totalorder %s16, 0
    %p120 = por %p118, %p119
    %p121 = scmp.ne.s32.totalorder %s113, %s115
    %p122 = scmp.eq.s32.totalorder %s21, 1
    %p123 = por %p121, %p122
    %p124 = scmp.ne.s32.totalorder %s115, %s116
    %p125 = scmp.eq.s32.totalorder %s21, 0
    %p126 = por %p124, %p125
    %p127 = scmp.ne.s32.totalorder %s115, %s116
    %p128 = scmp.eq.s32.totalorder %s22, 1
    %p129 = por %p127, %p128
    %p131 = scmp.ne.s32.totalorder %s116, %s130
    %p132 = scmp.eq.s32.totalorder %s22, 0
    %p133 = por %p131, %p132
    %s135 = sadd.s32 %s134, 1
    %p138 = scmp.eq.s32.totalorder %s16, 1
    %p139 = scmp.ne.s32.totalorder %s134, %s136
    %p140 = scmp.eq.s32.totalorder %s16, 0
    %p141 = por %p139, %p140
    %p142 = scmp.ne.s32.totalorder %s134, %s136
    %p143 = scmp.eq.s32.totalorder %s21, 1
    %p144 = por %p142, %p143
    %p145 = scmp.ne.s32.totalorder %s136, %s137
    %p146 = scmp.eq.s32.totalorder %s21, 0
    %p147 = por %p145, %p146
    %p148 = scmp.ne.s32.totalorder %s136, %s137
    %p149 = scmp.eq.s32.totalorder %s22, 1
    %p150 = por %p148, %p149
    %p152 = scmp.ne.s32.totalorder %s137, %s151
    %p153 = scmp.eq.s32.totalorder %s22, 0
    %p154 = por %p152, %p153
    %s156 = sadd.s32 %s155, 1
    %p159 = scmp.eq.s32.totalorder %s16, 1
    %p160 = scmp.ne.s32.totalorder %s155, %s157
    %p161 = scmp.eq.s32.totalorder %s16, 0
    %p162 = por %p160, %p161
    %p163 = scmp.ne.s32.totalorder %s155, %s157
    %p164 = scmp.eq.s32.totalorder %s21, 1
    %p165 = por %p163, %p164
    %p166 = scmp.ne.s32.totalorder %s157, %s158
    %p167 = scmp.eq.s32.totalorder %s21, 0
    %p168 = por %p166, %p167
    %p169 = scmp.ne.s32.totalorder %s157, %s158
    %p170 = scmp.eq.s32.totalorder %s22, 1
    %p171 = por %p169, %p170
    %p173 = scmp.ne.s32.totalorder %s158, %s172
    %p174 = scmp.eq.s32.totalorder %s22, 0
    %p175 = por %p173, %p174
    %s177 = sadd.s32 %s176, 1
    %p180 = scmp.eq.s32.totalorder %s16, 1
    %p181 = scmp.ne.s32.totalorder %s176, %s178
    %p182 = scmp.eq.s32.totalorder %s16, 0
    %p183 = por %p181, %p182
    %p184 = scmp.ne.s32.totalorder %s176, %s178
    %p185 = scmp.eq.s32.totalorder %s21, 1
    %p186 = por %p184, %p185
    %p187 = scmp.ne.s32.totalorder %s178, %s179
    %p188 = scmp.eq.s32.totalorder %s21, 0
    %p189 = por %p187, %p188
    %p190 = scmp.ne.s32.totalorder %s178, %s179
    %p191 = scmp.eq.s32.totalorder %s22, 1
    %p192 = por %p190, %p191
    %p194 = scmp.ne.s32.totalorder %s179, %s193
    %p195 = scmp.eq.s32.totalorder %s22, 0
    %p196 = por %p194, %p195
    %s198 = sadd.s32 %s197, 1
    %p201 = scmp.eq.s32.totalorder %s16, 1
    %p202 = scmp.ne.s32.totalorder %s197, %s199
    %p203 = scmp.eq.s32.totalorder %s16, 0
    %p204 = por %p202, %p203
    %p205 = scmp.ne.s32.totalorder %s197, %s199
    %p206 = scmp.eq.s32.totalorder %s21, 1
    %p207 = por %p205, %p206
    %p208 = scmp.ne.s32.totalorder %s199, %s200
    %p209 = scmp.eq.s32.totalorder %s21, 0
    %p210 = por %p208, %p209
    %p211 = scmp.ne.s32.totalorder %s199, %s200
    %p212 = scmp.eq.s32.totalorder %s22, 1
    %p213 = por %p211, %p212
    %p215 = scmp.ne.s32.totalorder %s200, %s214
    %p216 = scmp.eq.s32.totalorder %s22, 0
    %p217 = por %p215, %p216
    %s219 = sadd.s32 %s218, 1
    %p222 = scmp.eq.s32.totalorder %s16, 1
    %p223 = scmp.ne.s32.totalorder %s218, %s220
    %p224 = scmp.eq.s32.totalorder %s16, 0
    %p225 = por %p223, %p224
    %p226 = scmp.ne.s32.totalorder %s218, %s220
    %p227 = scmp.eq.s32.totalorder %s21, 1
    %p228 = por %p226, %p227
    %p229 = scmp.ne.s32.totalorder %s220, %s221
    %p230 = scmp.eq.s32.totalorder %s21, 0
    %p231 = por %p229, %p230
    %p232 = scmp.ne.s32.totalorder %s220, %s221
    %p233 = scmp.eq.s32.totalorder %s22, 1
    %p234 = por %p232, %p233
    %p236 = scmp.ne.s32.totalorder %s221, %s235
    %p237 = scmp.eq.s32.totalorder %s22, 0
    %p238 = por %p236, %p237
    %s239 = ssub.s32 %s16, %s23
    %p240 = scmp.eq.s32.totalorder %s239, 0
    %s242 = sadd.s32 %s241, 1
    %s243 = scalar_select %p240, %s241, %s242
    %p246 = pneg %p240
    %p247 = scmp.eq.s32.totalorder %s16, 1
    %p248 = por %p246, %p247
    %p249 = scmp.ne.s32.totalorder %s241, %s244
    %p250 = scmp.eq.s32.totalorder %s16, 0
    %p251 = por %p249, %p250
    %p252 = scmp.ne.s32.totalorder %s241, %s244
    %p253 = scmp.eq.s32.totalorder %s21, 1
    %p254 = por %p252, %p253
    %p255 = scmp.ne.s32.totalorder %s244, %s245
    %p256 = scmp.eq.s32.totalorder %s21, 0
    %p257 = por %p255, %p256
    %p258 = scmp.ne.s32.totalorder %s244, %s245
    %p259 = scmp.eq.s32.totalorder %s22, 1
    %p260 = por %p258, %p259
    %p262 = scmp.ne.s32.totalorder %s245, %s261
    %p263 = scmp.eq.s32.totalorder %s22, 0
    %p264 = por %p262, %p263
    %p265 = scmp.le.s32.totalorder 1, %s16
    %p266 = scmp.lt.s32.totalorder %s16, 3
    %p267 = pnand %p265, %p266
    %p268 = pneg %p267
    // Predicated region
    $region9: #{tpu_custom_call.1} parent=5 // pred_check
      _
    $region10: #{tpu_custom_call.1} parent=5 // pred_check_branch
      %270 = sbr.rel (%p267) target = $region12
    $region11: #{tpu_custom_call.1} parent=5 // pred_region
      %s271 = ssub.s32 %s16, 1
      // Predicated region
      $region13: #{tpu_custom_call.1} parent=11 // pred_check
        %p272 = pneg %p63
      $region14: #{tpu_custom_call.1} parent=11 // pred_check_branch
        %274 = sbr.rel (%p272) target = $region16
      $region15: #{tpu_custom_call.1} parent=11 // pred_region
        _
      $region16: #{tpu_custom_call.1} parent=11 // pred_fallthru
        _
      // Predicated region
      $region17: #{tpu_custom_call.1} parent=11 // pred_check
        %p275 = pneg %p84
      $region18: #{tpu_custom_call.1} parent=11 // pred_check_branch
        %277 = sbr.rel (%p275) target = $region20
      $region19: #{tpu_custom_call.1} parent=11 // pred_region
        _
      $region20: #{tpu_custom_call.1} parent=11 // pred_fallthru
        _
      // Predicated region
      $region21: #{tpu_custom_call.1} parent=11 // pred_check
        %p278 = pneg %p105
      $region22: #{tpu_custom_call.1} parent=11 // pred_check_branch
        %280 = sbr.rel (%p278) target = $region24
      $region23: #{tpu_custom_call.1} parent=11 // pred_region
        _
      $region24: #{tpu_custom_call.1} parent=11 // pred_fallthru
        _
      // Predicated region
      $region25: #{tpu_custom_call.1} parent=11 // pred_check
        %p281 = pneg %p126
      $region26: #{tpu_custom_call.1} parent=11 // pred_check_branch
        %283 = sbr.rel (%p281) target = $region28
      $region27: #{tpu_custom_call.1} parent=11 // pred_region
        _
      $region28: #{tpu_custom_call.1} parent=11 // pred_fallthru
        _
      // Predicated region
      $region29: #{tpu_custom_call.1} parent=11 // pred_check
        %p284 = pneg %p147
      $region30: #{tpu_custom_call.1} parent=11 // pred_check_branch
        %286 = sbr.rel (%p284) target = $region32
      $region31: #{tpu_custom_call.1} parent=11 // pred_region
        _
      $region32: #{tpu_custom_call.1} parent=11 // pred_fallthru
        _
      // Predicated region
      $region33: #{tpu_custom_call.1} parent=11 // pred_check
        %p287 = pneg %p168
      $region34: #{tpu_custom_call.1} parent=11 // pred_check_branch
        %289 = sbr.rel (%p287) target = $region36
      $region35: #{tpu_custom_call.1} parent=11 // pred_region
        _
      $region36: #{tpu_custom_call.1} parent=11 // pred_fallthru
        _
      // Predicated region
      $region37: #{tpu_custom_call.1} parent=11 // pred_check
        %p290 = pneg %p189
      $region38: #{tpu_custom_call.1} parent=11 // pred_check_branch
        %292 = sbr.rel (%p290) target = $region40
      $region39: #{tpu_custom_call.1} parent=11 // pred_region
        _
      $region40: #{tpu_custom_call.1} parent=11 // pred_fallthru
        _
      // Predicated region
      $region41: #{tpu_custom_call.1} parent=11 // pred_check
        %p293 = pneg %p210
      $region42: #{tpu_custom_call.1} parent=11 // pred_check_branch
        %295 = sbr.rel (%p293) target = $region44
      $region43: #{tpu_custom_call.1} parent=11 // pred_region
        _
      $region44: #{tpu_custom_call.1} parent=11 // pred_fallthru
        _
      // Predicated region
      $region45: #{tpu_custom_call.1} parent=11 // pred_check
        %p296 = pneg %p231
      $region46: #{tpu_custom_call.1} parent=11 // pred_check_branch
        %298 = sbr.rel (%p296) target = $region48
      $region47: #{tpu_custom_call.1} parent=11 // pred_region
        _
      $region48: #{tpu_custom_call.1} parent=11 // pred_fallthru
        _
    $region12: #{tpu_custom_call.1} parent=5 // pred_fallthru
      _
    %p299 = scmp.lt.s32.totalorder %s16, 2
    // Predicated region
    $region49: #{tpu_custom_call.1} parent=5 // pred_check
      %p300 = pneg %p299
    $region50: #{tpu_custom_call.1} parent=5 // pred_check_branch
      %302 = sbr.rel (%p300) target = $region52
    $region51: #{tpu_custom_call.1} parent=5 // pred_region
      // Predicated region
      $region53: #{tpu_custom_call.1} parent=51 // pred_check
        %p303 = pneg %p36
      $region54: #{tpu_custom_call.1} parent=51 // pred_check_branch
        %305 = sbr.rel (%p303) target = $region56
      $region55: #{tpu_custom_call.1} parent=51 // pred_region
        %s306 = smul.u32 2, %s16
        %p307 = scmp.lt.s32.totalorder %s306, 3
        %s308 = scalar_select %p307, %s306, 3
        %s309 = smul.addr %s308, 4
        %s310 = scalar_lea.vmem %s0, %s309
        %s311 = smul.u32 2, %s16
      $region56: #{tpu_custom_call.1} parent=51 // pred_fallthru
        _
    $region52: #{tpu_custom_call.1} parent=5 // pred_fallthru
      _
    %p312 = scmp.le.s32.totalorder 1, %s16
    %p313 = scmp.lt.s32.totalorder %s16, 3
    %p314 = pnand %p312, %p313
    %p315 = pneg %p314
    // Predicated region
    $region57: #{tpu_custom_call.1} parent=5 // pred_check
      _
    $region58: #{tpu_custom_call.1} parent=5 // pred_check_branch
      %317 = sbr.rel (%p314) target = $region60
    $region59: #{tpu_custom_call.1} parent=5 // pred_region
      %s318 = ssub.s32 %s16, 1
      %s319 = smul.u32 2, %s21
      %p320 = scmp.lt.s32.totalorder %s319, 3
      %s321 = scalar_select %p320, %s319, 3
      %s322 = smul.addr %s321, 4
      %s323 = scalar_lea.vmem %s0, %s322
      %p324 = pneg %p42
      %p325 = pneg %p39
      %p326 = pneg %p63
      %p327 = pneg %p60
      %p328 = pneg %p84
      %p329 = pneg %p81
      %p330 = pneg %p105
      %p331 = pneg %p102
      %p332 = pneg %p126
      %p333 = pneg %p123
      %p334 = pneg %p147
      %p335 = pneg %p144
      %p336 = pneg %p168
      %p337 = pneg %p165
      %p338 = pneg %p189
      %p339 = pneg %p186
      %p340 = pneg %p210
      %p341 = pneg %p207
      %p342 = pneg %p231
      %p343 = pneg %p228
      %p344 = pneg %p257
      %p345 = pneg %p254
      %s346 = smul.u32 2, %s21
      %p347 = scmp.lt.s32.totalorder %s346, 3
      %s348 = scalar_select %p347, %s346, 3
      %s349 = smul.addr %s348, 8
      %s350 = scalar_lea.vmem %s10, %s349
      %s351 = smul.u32 2, %s21
      %p352 = scmp.lt.s32.totalorder %s351, 3
      %s353 = scalar_select %p352, %s351, 3
      %s354 = smul.addr %s353, 4
      %s355 = scalar_lea.vmem %s0, %s354
      %s356 = smul.u32 2, %s21
      %s357 = smul.u32 2, %s21
      %p358 = scmp.lt.s32.totalorder %s357, 3
      %s359 = scalar_select %p358, %s357, 3
      %s360 = smul.addr %s359, 8
      %s361 = scalar_lea.vmem %s10, %s360
      %s362 = smul.u32 2, %s21
      %v364 = vld [vmem:[%s355] sm:$0xf]
      %v365 = vld [vmem:[%s355 + $0x4] sm:$0xf]
      %v366 = vunpack.c.l.bf16 %v364
      %v367 = vunpack.c.l.bf16 %v365
      %v368 = vlaneseq
      %v369 = vand.u32 %v368, 127
      %vm370 = vcmp.ge.s32.totalorder %v369, 48
      %vm371 = vcmp.lt.s32.totalorder %v369, 52
      %vm372 = vmand %vm370, %vm371
      %v373 = vtanh.pop %v366
      %v374 = vtanh.pop %v367
      %v375 = vsel %vm372, 1, 0
      %vm376 = vcmp.eq.s32.totalorder %v375, 1
      %v377 = vsel %vm376, %v373, %v366
      %v378 = vsel %vm376, %v374, %v367
      %v379 = vpack.c.bf16 %v378, %v377
      %v380 = vld [vmem:[%s1] sm:$0xf]
      %v381 = vld [vmem:[%s1 + $0x4] sm:$0xf]
      %v382 = vld [vmem:[%s1 + $0x8] sm:$0xf]
      %v383 = vld [vmem:[%s1 + $0xc] sm:$0xf]
      %v384 = vld [vmem:[%s1 + $0x10] sm:$0xf]
      %v385 = vld [vmem:[%s1 + $0x14] sm:$0xf]
      %v386 = vld [vmem:[%s1 + $0x18] sm:$0xf]
      %v387 = vld [vmem:[%s1 + $0x1c] sm:$0xf]
      %v388 = vld [vmem:[%s2] sm:$0x1]
      %v390 = vlaneseq
      %v391 = vshrl.u32 %v390, 7
      %v392 = vsub.s32 0, %v391
      %v393 = vrot.slane %v388, %v392
      %v403 = vunpack.c.l.b16 %v380
      %v404 = vunpack.c.l.b16 %v381
      %v405 = vunpack.c.l.b16 %v382
      %v406 = vunpack.c.l.b16 %v383
      %v407 = vunpack.c.l.b16 %v384
      %v408 = vunpack.c.l.b16 %v385
      %v409 = vunpack.c.l.b16 %v386
      %v410 = vunpack.c.l.b16 %v387
      %v411 = vpack.c.b16 %v404, %v403
      %v412 = vpack.c.b16 %v406, %v405
      %v413 = vpack.c.b16 %v408, %v407
      %v414 = vpack.c.b16 %v410, %v409
      %vm419 = vcmask 523264
      %v421 = vsel %vm419, %v379, 0
      %423 = vmatprep.subr.bf16.mxu0 0
      %424 = vmatpush1.bf16.msra.mxu0 %v411
      %425 = vmatprep.subr.bf16.mxu0 0
      %426 = vmatpush1.bf16.msra.mxu0 %v412
      %427 = vmatprep.subr.bf16.mxu0 0
      %428 = vmatpush1.bf16.msra.mxu0 %v413
      %429 = vmatprep.subr.bf16.mxu0 0
      %430 = vmatpush1.bf16.msra.mxu0 %v414
      %431 = vmatprep.subr.bf16.mxu0 0
      %432 = vmatpush1.bf16.msra.mxu0 0
      %433 = vmatprep.subr.bf16.mxu0 0
      %434 = vmatpush1.bf16.msra.mxu0 0
      %435 = vmatprep.subr.bf16.mxu0 0
      %436 = vmatpush1.bf16.msra.mxu0 0
      %437 = vmatprep.subr.bf16.mxu0 0
      %438 = vmatpush1.bf16.msra.mxu0 0
      %439 = vmatprep.subr.bf16.mxu0 0
      %440 = vmatpush1.bf16.msra.mxu0 0
      %441 = vmatprep.subr.bf16.mxu0 0
      %442 = vmatpush1.bf16.msra.mxu0 0
      %443 = vmatprep.subr.bf16.mxu0 0
      %444 = vmatpush1.bf16.msra.mxu0 0
      %445 = vmatprep.subr.bf16.mxu0 0
      %446 = vmatpush1.bf16.msra.mxu0 0
      %447 = vmatprep.subr.bf16.mxu0 0
      %448 = vmatpush1.bf16.msra.mxu0 0
      %449 = vmatprep.subr.bf16.mxu0 0
      %450 = vmatpush1.bf16.msra.mxu0 0
      %451 = vmatprep.subr.bf16.mxu0 0
      %452 = vmatpush1.bf16.msra.mxu0 0
      %453 = vmatprep.subr.bf16.mxu0 0
      %454 = vmatpush1.bf16.msra.mxu0 0
      %455 = vmatprep.mubr.bf16.mxu0 0
      %456 = vmatmul.mubr.bf16.gmra.mrb[0].mxu0 %v421
      %v457 = vpop.f32.mrb[0].mxu0
      %v458 = vadd.f32 %v393, %v457
      %v459 = vpop.f32.mrb[0].mxu0
      %v460 = vpop.f32.mrb[0].mxu0
      %v461 = vadd.f32 %v393, %v460
      %v462 = vpop.f32.mrb[0].mxu0
      %463 = vdwg.mxu0
      %v464 = vld [vmem:[%s3] sm:$0x1]
      %v466 = vlaneseq
      %v467 = vshrl.u32 %v466, 7
      %v468 = vsub.s32 0, %v467
      %v469 = vrot.slane %v464, %v468
      %v471 = vmax.f32 %v458, %v469
      %v472 = vmax.f32 %v461, %v469
      %v473 = vpack.c.bf16 %v472, %v471
      %v474 = vld [vmem:[%s4] sm:$0xf]
      %v475 = vld [vmem:[%s4 + $0x4] sm:$0xf]
      %v476 = vld [vmem:[%s4 + $0x8] sm:$0xf]
      %v477 = vld [vmem:[%s4 + $0xc] sm:$0xf]
      %v478 = vld [vmem:[%s4 + $0x10] sm:$0xf]
      %v479 = vld [vmem:[%s4 + $0x14] sm:$0xf]
      %v480 = vld [vmem:[%s4 + $0x18] sm:$0xf]
      %v481 = vld [vmem:[%s4 + $0x1c] sm:$0xf]
      %v482 = vld [vmem:[%s4 + $0x20] sm:$0xf]
      %v483 = vld [vmem:[%s4 + $0x24] sm:$0xf]
      %v484 = vld [vmem:[%s4 + $0x28] sm:$0xf]
      %v485 = vld [vmem:[%s4 + $0x2c] sm:$0xf]
      %v486 = vld [vmem:[%s4 + $0x30] sm:$0xf]
      %v487 = vld [vmem:[%s4 + $0x34] sm:$0xf]
      %v488 = vld [vmem:[%s4 + $0x38] sm:$0xf]
      %v489 = vld [vmem:[%s4 + $0x3c] sm:$0xf]
      %v490 = vld [vmem:[%s5] sm:$0x1]
      %v492 = vlaneseq
      %v493 = vshrl.u32 %v492, 7
      %v494 = vsub.s32 0, %v493
      %v495 = vrot.slane %v490, %v494
      %v513 = vunpack.c.l.b16 %v474
      %v514 = vunpack.c.l.b16 %v475
      %v515 = vunpack.c.l.b16 %v476
      %v516 = vunpack.c.l.b16 %v477
      %v517 = vunpack.c.l.b16 %v478
      %v518 = vunpack.c.l.b16 %v479
      %v519 = vunpack.c.l.b16 %v480
      %v520 = vunpack.c.l.b16 %v481
      %v521 = vunpack.c.l.b16 %v482
      %v522 = vunpack.c.l.b16 %v483
      %v523 = vunpack.c.l.b16 %v484
      %v524 = vunpack.c.l.b16 %v485
      %v525 = vunpack.c.l.b16 %v486
      %v526 = vunpack.c.l.b16 %v487
      %v527 = vunpack.c.l.b16 %v488
      %v528 = vunpack.c.l.b16 %v489
      %v529 = vpack.c.b16 %v514, %v513
      %v530 = vpack.c.b16 %v516, %v515
      %v531 = vpack.c.b16 %v518, %v517
      %v532 = vpack.c.b16 %v520, %v519
      %v533 = vpack.c.b16 %v522, %v521
      %v534 = vpack.c.b16 %v524, %v523
      %v535 = vpack.c.b16 %v526, %v525
      %v536 = vpack.c.b16 %v528, %v527
      %545 = vmatprep.subr.bf16.mxu0 0
      %546 = vmatpush1.bf16.msra.mxu0 %v529
      %547 = vmatprep.subr.bf16.mxu0 0
      %548 = vmatpush1.bf16.msra.mxu0 %v530
      %549 = vmatprep.subr.bf16.mxu0 0
      %550 = vmatpush1.bf16.msra.mxu0 %v531
      %551 = vmatprep.subr.bf16.mxu0 0
      %552 = vmatpush1.bf16.msra.mxu0 %v532
      %553 = vmatprep.subr.bf16.mxu0 0
      %554 = vmatpush1.bf16.msra.mxu0 %v533
      %555 = vmatprep.subr.bf16.mxu0 0
      %556 = vmatpush1.bf16.msra.mxu0 %v534
      %557 = vmatprep.subr.bf16.mxu0 0
      %558 = vmatpush1.bf16.msra.mxu0 %v535
      %559 = vmatprep.subr.bf16.mxu0 0
      %560 = vmatpush1.bf16.msra.mxu0 %v536
      %561 = vmatprep.subr.bf16.mxu0 0
      %562 = vmatpush1.bf16.msra.mxu0 0
      %563 = vmatprep.subr.bf16.mxu0 0
      %564 = vmatpush1.bf16.msra.mxu0 0
      %565 = vmatprep.subr.bf16.mxu0 0
      %566 = vmatpush1.bf16.msra.mxu0 0
      %567 = vmatprep.subr.bf16.mxu0 0
      %568 = vmatpush1.bf16.msra.mxu0 0
      %569 = vmatprep.subr.bf16.mxu0 0
      %570 = vmatpush1.bf16.msra.mxu0 0
      %571 = vmatprep.subr.bf16.mxu0 0
      %572 = vmatpush1.bf16.msra.mxu0 0
      %573 = vmatprep.subr.bf16.mxu0 0
      %574 = vmatpush1.bf16.msra.mxu0 0
      %575 = vmatprep.subr.bf16.mxu0 0
      %576 = vmatpush1.bf16.msra.mxu0 0
      %577 = vmatprep.mubr.bf16.mxu0 0
      %578 = vmatmul.mubr.bf16.gmra.mrb[0].mxu0 %v473
      %v579 = vpop.f32.mrb[0].mxu0
      %v580 = vadd.f32 %v495, %v579
      %v581 = vpop.f32.mrb[0].mxu0
      %v582 = vpop.f32.mrb[0].mxu0
      %v583 = vadd.f32 %v495, %v582
      %v584 = vpop.f32.mrb[0].mxu0
      %585 = vdwg.mxu0
      %v586 = vmax.f32 %v580, 0.0
      %v587 = vmax.f32 %v583, 0.0
      %v588 = vpack.c.bf16 %v587, %v586
      %v589 = vld [vmem:[%s6] sm:$0xf]
      %v590 = vld [vmem:[%s6 + $0x4] sm:$0xf]
      %v591 = vld [vmem:[%s6 + $0x8] sm:$0xf]
      %v592 = vld [vmem:[%s6 + $0xc] sm:$0xf]
      %v593 = vld [vmem:[%s6 + $0x10] sm:$0xf]
      %v594 = vld [vmem:[%s6 + $0x14] sm:$0xf]
      %v595 = vld [vmem:[%s6 + $0x18] sm:$0xf]
      %v596 = vld [vmem:[%s6 + $0x1c] sm:$0xf]
      %v597 = vld [vmem:[%s7] sm:$0x1]
      %v599 = vlaneseq
      %v600 = vshrl.u32 %v599, 7
      %v601 = vsub.s32 0, %v600
      %v602 = vrot.slane %v597, %v601
      %v612 = vunpack.c.l.b16 %v589
      %v613 = vunpack.c.l.b16 %v590
      %v614 = vunpack.c.l.b16 %v591
      %v615 = vunpack.c.l.b16 %v592
      %v616 = vunpack.c.l.b16 %v593
      %v617 = vunpack.c.l.b16 %v594
      %v618 = vunpack.c.l.b16 %v595
      %v619 = vunpack.c.l.b16 %v596
      %v620 = vpack.c.b16 %v613, %v612
      %v621 = vpack.c.b16 %v615, %v614
      %v622 = vpack.c.b16 %v617, %v616
      %v623 = vpack.c.b16 %v619, %v618
      %v629 = vsel %vm419, %v588, 0
      %631 = vmatprep.subr.bf16.mxu0 0
      %632 = vmatpush1.bf16.msra.mxu0 %v620
      %633 = vmatprep.subr.bf16.mxu0 0
      %634 = vmatpush1.bf16.msra.mxu0 %v621
      %635 = vmatprep.subr.bf16.mxu0 0
      %636 = vmatpush1.bf16.msra.mxu0 %v622
      %637 = vmatprep.subr.bf16.mxu0 0
      %638 = vmatpush1.bf16.msra.mxu0 %v623
      %639 = vmatprep.subr.bf16.mxu0 0
      %640 = vmatpush1.bf16.msra.mxu0 0
      %641 = vmatprep.subr.bf16.mxu0 0
      %642 = vmatpush1.bf16.msra.mxu0 0
      %643 = vmatprep.subr.bf16.mxu0 0
      %644 = vmatpush1.bf16.msra.mxu0 0
      %645 = vmatprep.subr.bf16.mxu0 0
      %646 = vmatpush1.bf16.msra.mxu0 0
      %647 = vmatprep.subr.bf16.mxu0 0
      %648 = vmatpush1.bf16.msra.mxu0 0
      %649 = vmatprep.subr.bf16.mxu0 0
      %650 = vmatpush1.bf16.msra.mxu0 0
      %651 = vmatprep.subr.bf16.mxu0 0
      %652 = vmatpush1.bf16.msra.mxu0 0
      %653 = vmatprep.subr.bf16.mxu0 0
      %654 = vmatpush1.bf16.msra.mxu0 0
      %655 = vmatprep.subr.bf16.mxu0 0
      %656 = vmatpush1.bf16.msra.mxu0 0
      %657 = vmatprep.subr.bf16.mxu0 0
      %658 = vmatpush1.bf16.msra.mxu0 0
      %659 = vmatprep.subr.bf16.mxu0 0
      %660 = vmatpush1.bf16.msra.mxu0 0
      %661 = vmatprep.subr.bf16.mxu0 0
      %662 = vmatpush1.bf16.msra.mxu0 0
      %663 = vmatprep.mubr.bf16.mxu0 0
      %664 = vmatmul.mubr.bf16.gmra.mrb[0].mxu0 %v629
      %v665 = vpop.f32.mrb[0].mxu0
      %v666 = vadd.f32 %v602, %v665
      %v667 = vpop.f32.mrb[0].mxu0
      %v668 = vpop.f32.mrb[0].mxu0
      %v669 = vadd.f32 %v602, %v668
      %v670 = vpop.f32.mrb[0].mxu0
      %671 = vdwg.mxu0
      %v672 = vmax.f32 %v666, 0.0
      %v673 = vmax.f32 %v669, 0.0
      %v674 = vpack.c.bf16 %v673, %v672
      %v675 = vld [vmem:[%s8] sm:$0xf]
      %v676 = vld [vmem:[%s8 + $0x4] sm:$0xf]
      %v677 = vld [vmem:[%s8 + $0x8] sm:$0xf]
      %v678 = vld [vmem:[%s8 + $0xc] sm:$0xf]
      %v679 = vld [vmem:[%s8 + $0x10] sm:$0xf]
      %v680 = vld [vmem:[%s8 + $0x14] sm:$0xf]
      %v681 = vld [vmem:[%s8 + $0x18] sm:$0xf]
      %v682 = vld [vmem:[%s8 + $0x1c] sm:$0xf]
      %v683 = vld [vmem:[%s9] sm:$0x1]
      %v685 = vlaneseq
      %v686 = vshrl.u32 %v685, 7
      %v687 = vsub.s32 0, %v686
      %v688 = vrot.slane %v683, %v687
      %v698 = vunpack.c.l.b16 %v675
      %v699 = vunpack.c.l.b16 %v676
      %v700 = vunpack.c.l.b16 %v677
      %v701 = vunpack.c.l.b16 %v678
      %v702 = vunpack.c.l.b16 %v679
      %v703 = vunpack.c.l.b16 %v680
      %v704 = vunpack.c.l.b16 %v681
      %v705 = vunpack.c.l.b16 %v682
      %v706 = vpack.c.b16 %v699, %v698
      %v707 = vpack.c.b16 %v701, %v700
      %v708 = vpack.c.b16 %v703, %v702
      %v709 = vpack.c.b16 %v705, %v704
      %v715 = vsel %vm419, %v674, 0
      %717 = vmatprep.subr.bf16.mxu0 0
      %718 = vmatpush1.bf16.msra.mxu0 %v706
      %719 = vmatprep.subr.bf16.mxu0 0
      %720 = vmatpush1.bf16.msra.mxu0 %v707
      %721 = vmatprep.subr.bf16.mxu0 0
      %722 = vmatpush1.bf16.msra.mxu0 %v708
      %723 = vmatprep.subr.bf16.mxu0 0
      %724 = vmatpush1.bf16.msra.mxu0 %v709
      %725 = vmatprep.subr.bf16.mxu0 0
      %726 = vmatpush1.bf16.msra.mxu0 0
      %727 = vmatprep.subr.bf16.mxu0 0
      %728 = vmatpush1.bf16.msra.mxu0 0
      %729 = vmatprep.subr.bf16.mxu0 0
      %730 = vmatpush1.bf16.msra.mxu0 0
      %731 = vmatprep.subr.bf16.mxu0 0
      %732 = vmatpush1.bf16.msra.mxu0 0
      %733 = vmatprep.subr.bf16.mxu0 0
      %734 = vmatpush1.bf16.msra.mxu0 0
      %735 = vmatprep.subr.bf16.mxu0 0
      %736 = vmatpush1.bf16.msra.mxu0 0
      %737 = vmatprep.subr.bf16.mxu0 0
      %738 = vmatpush1.bf16.msra.mxu0 0
      %739 = vmatprep.subr.bf16.mxu0 0
      %740 = vmatpush1.bf16.msra.mxu0 0
      %741 = vmatprep.subr.bf16.mxu0 0
      %742 = vmatpush1.bf16.msra.mxu0 0
      %743 = vmatprep.subr.bf16.mxu0 0
      %744 = vmatpush1.bf16.msra.mxu0 0
      %745 = vmatprep.subr.bf16.mxu0 0
      %746 = vmatpush1.bf16.msra.mxu0 0
      %747 = vmatprep.subr.bf16.mxu0 0
      %748 = vmatpush1.bf16.msra.mxu0 0
      %749 = vmatprep.mubr.bf16.mxu0 0
      %750 = vmatmul.mubr.bf16.gmra.mrb[0].mxu0 %v715
      %v751 = vpop.f32.mrb[0].mxu0
      %v752 = vadd.f32 %v688, %v751
      %v753 = vpop.f32.mrb[0].mxu0
      %v754 = vpop.f32.mrb[0].mxu0
      %v755 = vadd.f32 %v688, %v754
      %v756 = vpop.f32.mrb[0].mxu0
      %757 = vdwg.mxu0
      %vm758 = vcmask 130048
      %759 = vst.msk [vmem:[%s361] sm:$0xff] %vm758, %v752
      %760 = vst.msk [vmem:[%s361 + $0x8] sm:$0xff] %vm758, %v755
      %s761 = smul.u32 2, %s21
      %p762 = scmp.lt.s32.totalorder %s761, 3
      %s763 = scalar_select %p762, %s761, 3
      %s764 = smul.addr %s763, 8
      %s765 = scalar_lea.vmem %s10, %s764
      // Predicated region
      $region61: #{tpu_custom_call.1} parent=59 // pred_check
        %p766 = pneg %p254
      $region62: #{tpu_custom_call.1} parent=59 // pred_check_branch
        %768 = sbr.rel (%p766) target = $region64
      $region63: #{tpu_custom_call.1} parent=59 // pred_region
        %s769 = smul.u32 2, %s21
      $region64: #{tpu_custom_call.1} parent=59 // pred_fallthru
        _
    $region60: #{tpu_custom_call.1} parent=5 // pred_fallthru
      _
    %p770 = scmp.le.s32.totalorder 2, %s16
    // Predicated region
    $region65: #{tpu_custom_call.1} parent=5 // pred_check
      %p771 = pneg %p770
    $region66: #{tpu_custom_call.1} parent=5 // pred_check_branch
      %773 = sbr.rel (%p771) target = $region68
    $region67: #{tpu_custom_call.1} parent=5 // pred_region
      %s774 = ssub.s32 %s16, 2
      // Predicated region
      $region69: #{tpu_custom_call.1} parent=67 // pred_check
        %p775 = pneg %p260
      $region70: #{tpu_custom_call.1} parent=67 // pred_check_branch
        %777 = sbr.rel (%p775) target = $region72
      $region71: #{tpu_custom_call.1} parent=67 // pred_region
        %s778 = smul.u32 2, %s22
        %p779 = scmp.lt.s32.totalorder %s778, 3
        %s780 = scalar_select %p779, %s778, 3
        %s781 = smul.addr %s780, 8
        %s782 = scalar_lea.vmem %s10, %s781
      $region72: #{tpu_custom_call.1} parent=67 // pred_fallthru
        _
    $region68: #{tpu_custom_call.1} parent=5 // pred_fallthru
      _
  $region6: #{tpu_custom_call.1} parent=0 // loop_footer
    %s20 = sadd.s32 1, %s16
  $region7: #{tpu_custom_call.1} parent=0 // loop_footer_branch
    %15 = sbr.rel target = $region3
  $region8: #{tpu_custom_call.1} parent=0 // loop_exit
    _

</llo_original>
